<compile_context>
chip_gen: v6e
topology: v6e:2x2x1
jax: 0.10.0
libtpu: 0.0.40
codegen_flags: <defaults>
</compile_context>

<pallas_src>
import jax
import jax.numpy as jnp
from jax.experimental import pallas as pl
from jax.experimental.pallas import tpu as pltpu


def _linear_kernel(x_ref, w_ref, b_ref, o_ref):
    # x_ref: (TB, D) streamed VMEM tile; w_ref: (D, 1) resident VMEM weight;
    # b_ref: (1,) SMEM scalar bias; o_ref: (1, TB) lane-dense output row slab.
    acc = jnp.dot(x_ref[...], w_ref[...],
                  preferred_element_type=jnp.float32)      # (TB, 1) on the MXU
    y = acc[:, 0] + b_ref[0]                               # (TB,) + scalar bias
    o_ref[0, :] = y.astype(o_ref.dtype)                    # lane-dense store


def _round_up(x, m):
    return ((x + m - 1) // m) * m


def _vmem_capacity_bytes():
    try:
        return int(pltpu.get_tpu_info().vmem_capacity_bytes)
    except Exception:
        return 64 * 1024 * 1024  # conservative fallback (v7x per-TC size)


def _choose_batch_tile(batch, dim, itemsize):
    """Byte-budgeted batch tile for the streamed x blocks.

    Each (TB, D) VMEM block physically occupies TB * round_up(D, 128) * itemsize
    bytes (lane padding) and is double-buffered. We target ~4 MiB per block
    (2-8 MiB band) to amortize grid-step overhead, stay inside a
    generation-aware budget, and keep >= ~4 tiles for pipelining / megacore.
    """
    padded_row_bytes = _round_up(max(dim, 1), 128) * itemsize
    vmem_cap = _vmem_capacity_bytes()
    # Double-buffered x budget: ~24 MiB on 64 MiB-VMEM parts (v7x),
    # ~40 MiB on 128 MiB-VMEM parts (v5e/v6e).
    x_budget = (24 << 20) if vmem_cap <= (64 << 20) else (40 << 20)

    tb_cap = max(128, (((x_budget // 2) // padded_row_bytes) // 128) * 128)
    tb_target = max(128, (((4 << 20) // padded_row_bytes) // 128) * 128)
    tb = min(tb_cap, tb_target)

    if batch <= 512:
        # Genuinely small batch: single full block (block == array dims is legal).
        return batch

    # Ensure at least ~4 grid tiles so the "parallel" batch axis can shard
    # across TensorCores (v7x) and the x DMA pipelines against compute.
    min_tiles = 4
    tb = min(tb, _round_up(pl.cdiv(batch, min_tiles), 128))
    return max(128, tb)


def similarity_model_forward(x, weight, bias, *, batch_tile=None):
    """Pallas equivalent of SimilarityModel.forward: nn.Linear(input_dim, 1)."""
    B, D = x.shape
    assert weight.shape == (1, D)
    assert bias.shape == (1,)

    tb = batch_tile if batch_tile is not None else _choose_batch_tile(
        B, D, x.dtype.itemsize)
    num_tiles = pl.cdiv(B, tb)

    # MXU path: contract as (TB, D) @ (D, 1). Weight in x's dtype so bf16 feeds
    # the MXU natively; accumulation is f32 via preferred_element_type.
    w_col = weight.reshape(D, 1).astype(x.dtype)
    b = bias.astype(jnp.float32)

    # Explicit scoped-VMEM limit: 32 MiB on 64 MiB-VMEM v7x, 64 MiB on
    # 128 MiB-VMEM v5e/v6e (covers x double-buffer + weight/output/scratch).
    vmem_limit = int(min(_vmem_capacity_bytes(), 128 << 20) // 2)

    out = pl.pallas_call(
        _linear_kernel,
        out_shape=jax.ShapeDtypeStruct((1, num_tiles * tb), x.dtype),
        grid_spec=pltpu.PrefetchScalarGridSpec(
            num_scalar_prefetch=0,
            grid=(num_tiles,),
            in_specs=[
                pl.BlockSpec((tb, D), lambda i: (i, 0)),            # x tile, pipelined
                pl.BlockSpec((D, 1), lambda i: (0, 0)),             # weight, resident
                pl.BlockSpec(memory_space=pltpu.MemorySpace.SMEM),  # bias scalar
            ],
            out_specs=pl.BlockSpec((1, tb), lambda i: (0, i)),      # lane-dense row
        ),
        compiler_params=pltpu.CompilerParams(
            dimension_semantics=("parallel",),  # shard batch tiles across TCs (v7x)
            vmem_limit_bytes=vmem_limit,
        ),
        cost_estimate=pl.CostEstimate(
            flops=2 * B * D,
            transcendentals=0,
            bytes_accessed=(B * D + D + B) * x.dtype.itemsize + bias.dtype.itemsize,
        ),
    )(x, w_col, b)

    # Rows past B in the last (partial) x tile are computed on padding and
    # discarded here; the kernel itself never reduces across tiles.
    return out[0, :B].reshape(B, 1)


if __name__ == "__main__":
    key = jax.random.PRNGKey(0)
    kx, kw, kb, kx2 = jax.random.split(key, 4)

    batch = 8
    input_dim = 32

    # Parameters matching nn.Linear(input_dim, 1): weight (1, D), bias (1,).
    bound = 1.0 / (input_dim ** 0.5)
    weight = jax.random.uniform(kw, (1, input_dim), jnp.float32, -bound, bound)
    bias = jax.random.uniform(kb, (1,), jnp.float32, -bound, bound)

    # --- small shape (single full-block path) ---
    x = jax.random.normal(kx, (batch, input_dim), jnp.float32)
    out = jax.block_until_ready(similarity_model_forward(x, weight, bias))
    ref = x @ weight.T + bias
    assert out.shape == (batch, 1)
    assert jnp.allclose(out, ref, atol=1e-5, rtol=1e-5), "mismatch vs reference (small)"

    # --- multi-tile path with a partial last tile (exercises pipelining) ---
    big_batch = 300
    x2 = jax.random.normal(kx2, (big_batch, input_dim), jnp.float32)
    out2 = jax.block_until_ready(
        similarity_model_forward(x2, weight, bias, batch_tile=128)
    )
    ref2 = x2 @ weight.T + bias
    assert out2.shape == (big_batch, 1)
    assert jnp.allclose(out2, ref2, atol=1e-5, rtol=1e-5), "mismatch vs reference (tiled)"

    print("KERNEL_OK")
</pallas_src>

<mosaic_0001>
module attributes {stable_mosaic.version = 11 : i64} {
  func.func @_linear_kernel(%arg0: i32, %arg1: memref<8x32xf32, #tpu.memory_space<vmem>>, %arg2: memref<32x1xf32, #tpu.memory_space<vmem>>, %arg3: memref<1xf32, #tpu.memory_space<smem>>, %arg4: memref<1x8xf32, #tpu.memory_space<vmem>>) attributes {dimension_semantics = [#tpu.dimension_semantics<parallel>], iteration_bounds = array<i64: 1>, scalar_prefetch = 0 : i64, scratch_operands = 0 : i64, tpu.core_type = #tpu.core_type<tc>, window_params = [{transform_indices = @transform_0, window_bounds = array<i64: 8, 32>}, {pipeline_mode = #tpu.pipeline_mode<synchronous>, transform_indices = @transform_1, window_bounds = array<i64: 32, 1>}, {transform_indices = @transform_2, window_bounds = array<i64: 1>}, {transform_indices = @transform_3, window_bounds = array<i64: 1, 8>}]} {
    %c0 = arith.constant 0 : index
    %c0_0 = arith.constant 0 : index
    %0 = vector.load %arg1[%c0, %c0_0] : memref<8x32xf32, #tpu.memory_space<vmem>>, vector<8x32xf32>
    %c0_1 = arith.constant 0 : index
    %c0_2 = arith.constant 0 : index
    %1 = vector.load %arg2[%c0_1, %c0_2] : memref<32x1xf32, #tpu.memory_space<vmem>>, vector<32x1xf32>
    %cst = arith.constant dense<0.000000e+00> : vector<8x1xf32>
    %2 = tpu.matmul %0, %1, %cst {dimension_numbers = #tpu.dot_dimension_numbers<[1], [0], [0], [1], [0, 0, 1, 1], [], []>} : vector<8x32xf32>, vector<32x1xf32>, vector<8x1xf32> -> vector<8x1xf32>
    %3 = vector.shape_cast %2 : vector<8x1xf32> to vector<8xf32>
    %c0_3 = arith.constant 0 : index
    %4 = memref.load %arg3[%c0_3] : memref<1xf32, #tpu.memory_space<smem>>
    %5 = vector.broadcast %4 : f32 to vector<8xf32>
    %6 = arith.addf %3, %5 : vector<8xf32>
    %c0_4 = arith.constant 0 : index
    %c0_5 = arith.constant 0 : index
    %7 = vector.load %arg4[%c0_4, %c0_5] : memref<1x8xf32, #tpu.memory_space<vmem>>, vector<1x8xf32>
    %8 = vector.shape_cast %7 : vector<1x8xf32> to vector<8xf32>
    %9 = vector.shape_cast %6 : vector<8xf32> to vector<1x8xf32>
    tpu.vector_store %arg4[%c0_4, %c0_5], %9 {strides = array<i32>} : memref<1x8xf32, #tpu.memory_space<vmem>>, vector<1x8xf32>,
    return
  }
  func.func @transform_0(%arg0: i32) -> (i32, i32) {
    %c0_i32 = arith.constant 0 : i32
    %c0_i32_0 = arith.constant 0 : i32
    return %arg0, %c0_i32 : i32, i32
  }
  func.func @transform_1(%arg0: i32) -> (i32, i32) {
    %c0_i32 = arith.constant 0 : i32
    %c0_i32_0 = arith.constant 0 : i32
    %c0_i32_1 = arith.constant 0 : i32
    return %c0_i32, %c0_i32_0 : i32, i32
  }
  func.func @transform_2(%arg0: i32) -> i32 {
    %c0_i32 = arith.constant 0 : i32
    %c0_i32_0 = arith.constant 0 : i32
    return %c0_i32 : i32
  }
  func.func @transform_3(%arg0: i32) -> (i32, i32) {
    %c0_i32 = arith.constant 0 : i32
    %c0_i32_0 = arith.constant 0 : i32
    return %c0_i32, %arg0 : i32, i32
  }
}

</mosaic_0001>

<llo_original>
// kernel: tpu_custom_call.1
$region0: #{tpu_custom_call.1}
  #allocation0 [shape = 'u32[]', space=smem, size = 0x4, offset = 0x4, fixed_abs, tag = 'smem constant byte address 0x4 - core index']
  #allocation1 [shape = 'u32[144,128]{1,0:T(1,128)}', space=vmem, size = 0x12000, scoped, tag = 'internal scratch']
  #allocation2 [shape = 'f32[1]{0:T(128)S(6)}', space=smem, size = 0x200, scoped, tag = 'scoped memory for tpu_custom_call.1']
  %s0 = inlined_call_operand.vmem [shape: f32[8,32], index: 0, kind: input, shape index: {}]
  %s1 = inlined_call_operand.vmem [shape: f32[32,1], index: 1, kind: input, shape index: {}]
  %s2 = inlined_call_operand.<no memory space> [shape: f32[1], index: 2, kind: input, shape index: {}]
  %s3 = inlined_call_operand.hbm [shape: f32[1,8], index: 3, kind: output, shape index: {}]
  %s4 = sld [smem:[#allocation0]]
  $region22: #{tpu_custom_call.1} parent=0
    _
  %s6 = ssub.s32 1, %s4
  %s7 = scalar_select 0, %s6, %s4
  %8 = sst [smem:[#allocation2]] %s2
  $region1: #{tpu_custom_call.1} parent=0
    #allocation3 [shape = 'u8[512]{0}', space=vmem, size = 0x400, scoped, tag = 'output window, operand 0, single buffered']
    #allocation4 [shape = 's32[1]{0}', space=sflag, size = 0x4, scoped, tag = 'scoped memory for tpu_custom_call.1']
    %9 = vsyncpa [#allocation4], 0
    // Predicated region
    $region2: #{tpu_custom_call.1} parent=1 // pred_check
      _
    $region3: #{tpu_custom_call.1} parent=1 // pred_check_branch
      %11 = sbr.rel (0) target = $region5
    $region4: #{tpu_custom_call.1} parent=1 // pred_region
      _
    $region5: #{tpu_custom_call.1} parent=1 // pred_fallthru
      _
    // Predicated region
    $region6: #{tpu_custom_call.1} parent=1 // pred_check
      _
    $region7: #{tpu_custom_call.1} parent=1 // pred_check_branch
      %13 = sbr.rel (0) target = $region9
    $region8: #{tpu_custom_call.1} parent=1 // pred_region
      _
    $region9: #{tpu_custom_call.1} parent=1 // pred_fallthru
      _
    // Predicated region
    $region10: #{tpu_custom_call.1} parent=1 // pred_check
      _
    $region11: #{tpu_custom_call.1} parent=1 // pred_check_branch
      %15 = sbr.rel (0) target = $region13
    $region12: #{tpu_custom_call.1} parent=1 // pred_region
      _
    $region13: #{tpu_custom_call.1} parent=1 // pred_fallthru
      _
    %v16 = vld [vmem:[%s0] sm:$0xff]
    %v17 = vld [vmem:[%s1] sm:$0xff]
    %v18 = vld [vmem:[%s1 + $0x8] sm:$0xff]
    %v19 = vld [vmem:[%s1 + $0x10] sm:$0xff]
    %v20 = vld [vmem:[%s1 + $0x18] sm:$0xff]
    %vm21 = vcmask 261120
    %v23 = vsel %vm21, %v16, 0
    %25 = vmatprep.subr.mxu0 0.0
    %26 = vmatpush1.msra.mxu0 0.0
    %27 = vmatprep.subr.mxu0 0.0
    %28 = vmatpush1.msra.mxu0 0.0
    %29 = vmatprep.subr.mxu0 0.0
    %30 = vmatpush1.msra.mxu0 0.0
    %31 = vmatprep.subr.mxu0 0.0
    %32 = vmatpush1.msra.mxu0 0.0
    %33 = vmatprep.subr.mxu0 0.0
    %34 = vmatpush1.msra.mxu0 0.0
    %35 = vmatprep.subr.mxu0 0.0
    %36 = vmatpush1.msra.mxu0 0.0
    %37 = vmatprep.subr.mxu0 0.0
    %38 = vmatpush1.msra.mxu0 0.0
    %39 = vmatprep.subr.mxu0 0.0
    %40 = vmatpush1.msra.mxu0 0.0
    %41 = vmatprep.subr.mxu0 0.0
    %42 = vmatpush1.msra.mxu0 0.0
    %43 = vmatprep.subr.mxu0 0.0
    %44 = vmatpush1.msra.mxu0 0.0
    %45 = vmatprep.subr.mxu0 0.0
    %46 = vmatpush1.msra.mxu0 0.0
    %47 = vmatprep.subr.mxu0 0.0
    %48 = vmatpush1.msra.mxu0 0.0
    %49 = vmatprep.subr.mxu0 0.0
    %50 = vmatpush1.msra.mxu0 %v20
    %51 = vmatprep.subr.mxu0 0.0
    %52 = vmatpush1.msra.mxu0 %v19
    %53 = vmatprep.subr.mxu0 0.0
    %54 = vmatpush1.msra.mxu0 %v18
    %55 = vmatprep.subr.mxu0 0.0
    %56 = vmatpush1.msra.mxu0 %v17
    %57 = vmatprep.subr.mxu0 0.0
    %58 = vmatpush2.msra.mxu0 0.0
    %59 = vmatprep.subr.mxu0 0.0
    %60 = vmatpush2.msra.mxu0 0.0
    %61 = vmatprep.subr.mxu0 0.0
    %62 = vmatpush2.msra.mxu0 0.0
    %63 = vmatprep.subr.mxu0 0.0
    %64 = vmatpush2.msra.mxu0 0.0
    %65 = vmatprep.subr.mxu0 0.0
    %66 = vmatpush2.msra.mxu0 0.0
    %67 = vmatprep.subr.mxu0 0.0
    %68 = vmatpush2.msra.mxu0 0.0
    %69 = vmatprep.subr.mxu0 0.0
    %70 = vmatpush2.msra.mxu0 0.0
    %71 = vmatprep.subr.mxu0 0.0
    %72 = vmatpush2.msra.mxu0 0.0
    %73 = vmatprep.subr.mxu0 0.0
    %74 = vmatpush2.msra.mxu0 0.0
    %75 = vmatprep.subr.mxu0 0.0
    %76 = vmatpush2.msra.mxu0 0.0
    %77 = vmatprep.subr.mxu0 0.0
    %78 = vmatpush2.msra.mxu0 0.0
    %79 = vmatprep.subr.mxu0 0.0
    %80 = vmatpush2.msra.mxu0 0.0
    %81 = vmatprep.subr.mxu0 0.0
    %82 = vmatpush2.msra.mxu0 0.0
    %83 = vmatprep.subr.mxu0 0.0
    %84 = vmatpush2.msra.mxu0 0.0
    %85 = vmatprep.subr.mxu0 0.0
    %86 = vmatpush2.msra.mxu0 0.0
    %87 = vmatprep.subr.mxu0 0.0
    %88 = vmatpush2.msra.mxu0 0.0
    %89 = vmatprep.mubr.f32.mxu0 0.0
    %90 = vmatmul.mubr.f32.gmra.mxu0 %v23
    %v91 = vpop.f32.mrf.mxu0
    %v92 = vadd.f32 0.0, %v91
    %v93 = vpop.f32.mrf.mxu0
    %94 = vdwg.mxu0
    %s95 = sld [smem:[#allocation2]]
    %v96 = vstv %s95
    %v97 = vadd.f32 %v92, %v96
    %99 = vset.pattern.permute.xlu0 0
    %100 = vperm.xlu0 %99, %v97
    %v101 = vpop.permute.xlu0 %100
    %v102 = vlaneseq
    %v103 = vand.u32 %v102, 127
    %v104 = vlaneseq
    %v105 = vshrl.u32 %v104, 7
    %v106 = vsub.s32 %v103, %v105
    %v107 = vrot.slane %v101, %v106
    %vm109 = vcmask 57344
    %110 = vst.msk [vmem:[#allocation3] sm:$0x1] %vm109, %v107
    // Predicated region
    $region14: #{tpu_custom_call.1} parent=1 // pred_check
      _
    $region15: #{tpu_custom_call.1} parent=1 // pred_check_branch
      %112 = sbr.rel (0) target = $region17
    $region16: #{tpu_custom_call.1} parent=1 // pred_region
      %s114 = ssub.s32 16, 16
      %115 = vsyncadd [#allocation4], %s114
      %s117 = sshll.u32 [#allocation3], 4
      %s118 = int_to_ptr.vmem [resolvable:$true] %s117
      %120 = dma.vmem_to_hbm [thread:$0]  %s118, 16, %s3, [#allocation4]
    $region17: #{tpu_custom_call.1} parent=1 // pred_fallthru
      _
    // Predicated region
    $region18: #{tpu_custom_call.1} parent=1 // pred_check
      _
    $region19: #{tpu_custom_call.1} parent=1 // pred_check_branch
      %122 = sbr.rel (0) target = $region21
    $region20: #{tpu_custom_call.1} parent=1 // pred_region
      %123 = dma.done [#allocation4], 16
    $region21: #{tpu_custom_call.1} parent=1 // pred_fallthru
      _
    %124 = vsyncpa [#allocation4], 1

</llo_original>
